<compile_context>
chip_gen: v5e
topology: v5e:2x2
jax: 0.10.0
libtpu: 0.0.40
codegen_flags: <defaults>
</compile_context>

<pallas_src>
import jax
import jax.numpy as jnp
from jax.experimental import pallas as pl
from jax.experimental.pallas import tpu as pltpu


def _round_up(a, b):
    return ((a + b - 1) // b) * b


def _pick_tile_m(m):
    # Prefer an exact divisor (no padding); otherwise a hardware-friendly tile.
    for tm in (512, 256, 128, 64, 32, 16, 8):
        if m % tm == 0:
            return tm
    if m >= 512:
        return 512
    if m >= 256:
        return 256
    return _round_up(m, 8)


def _proj_kernel(p_ref, w_ref, add_ref, out_ref):
    # p_ref:   (TM, K) bf16   -- flattened patches tile (rows of B*N)
    # w_ref:   (K, E)  bf16   -- conv weight, flattened & transposed (resident)
    # add_ref: (1, E)  f32    -- conv bias (+ broadcast positional row) folded
    # out_ref: (TM, E)        -- projection rows only (no cls prefix in-kernel)
    acc = jnp.dot(p_ref[...], w_ref[...], preferred_element_type=jnp.float32)
    out_ref[...] = (acc + add_ref[...]).astype(out_ref.dtype)


def patch_embedding(x, conv_w, conv_b, cls_tok, positions, patch_size):
    """x: (B, C, H, W) NCHW.  conv_w: (E, C, p, p).  Returns (B, N+1, E)."""
    B, C, H, W = x.shape
    E = conv_w.shape[0]
    p = patch_size
    Hp, Wp = H // p, W // p
    N = Hp * Wp
    K = C * p * p
    M = B * N
    out_dtype = x.dtype

    # --- glue: patchify NCHW -> (B*N, K) (pure reshape/transpose, no compute) ---
    # TODO(synk): fold this transpose into the kernel (or accept NHWC input) to
    # avoid one extra HBM read+write of the activations.
    patches = (x.reshape(B, C, Hp, p, Wp, p)
                 .transpose(0, 2, 4, 1, 3, 5)
                 .reshape(M, K))
    w_mat = conv_w.reshape(E, K).T                       # (K, E)

    # bf16 operands, f32 accumulation on the MXU.
    patches_bf = patches.astype(jnp.bfloat16)
    w_bf = w_mat.astype(jnp.bfloat16)

    # Fold conv bias (+ the single broadcast positional row, per the module's
    # `img_size // patch_size**2 + 1` formula) into one epilogue add.
    conv_b_f32 = conv_b.astype(jnp.float32)
    positions_f32 = positions.astype(jnp.float32)
    if positions_f32.shape[0] == 1:
        add_row = (conv_b_f32 + positions_f32[0]).reshape(1, E)
        pos_patch_rows = None
    else:                                                # per-token positions (N+1, E)
        add_row = conv_b_f32.reshape(1, E)
        pos_patch_rows = positions_f32[1:]               # (N, E)
    pos_cls = positions_f32[0]

    # Tile the flattened M = B*N rows (8-sublane aligned, lane-dense E).
    TM = _pick_tile_m(M)
    Mp = _round_up(M, TM)
    if Mp != M:
        patches_bf = jnp.pad(patches_bf, ((0, Mp - M), (0, 0)))

    grid = (Mp // TM,)

    cost = pl.CostEstimate(
        flops=2 * Mp * K * E,
        transcendentals=0,
        bytes_accessed=(Mp * K * 2 + K * E * 2
                        + Mp * E * jnp.dtype(out_dtype).itemsize),
    )

    proj_flat = pl.pallas_call(
        _proj_kernel,
        out_shape=jax.ShapeDtypeStruct((Mp, E), out_dtype),
        grid=grid,
        in_specs=[
            pl.BlockSpec((TM, K), lambda i: (i, 0)),     # patch rows tile
            pl.BlockSpec((K, E), lambda i: (0, 0)),      # resident weight
            pl.BlockSpec((1, E), lambda i: (0, 0)),      # bias (+pos) row
        ],
        out_specs=pl.BlockSpec((TM, E), lambda i: (i, 0)),
        compiler_params=pltpu.CompilerParams(
            dimension_semantics=("parallel",)),
        cost_estimate=cost,
    )(patches_bf, w_bf, add_row)

    proj = proj_flat[:M].reshape(B, N, E)
    if pos_patch_rows is not None:
        proj = (proj.astype(jnp.float32) + pos_patch_rows[None]).astype(out_dtype)

    # cls row (B*E values): trivial, handled in plain JAX so the kernel's
    # stores stay 8-sublane aligned and lane-dense.
    cls_row = (cls_tok.reshape(1, 1, E).astype(jnp.float32) + pos_cls).astype(out_dtype)
    cls_b = jnp.broadcast_to(cls_row, (B, 1, E))
    return jnp.concatenate([cls_b, proj], axis=1)


if __name__ == "__main__":
    # Small config consistent with the module's __init__ arithmetic:
    # positions has shape (img_size // patch_size**2 + 1, E); with img_size=8,
    # patch_size=4 that is (1, E), which broadcasts over the sequence dim
    # exactly like the PyTorch defaults (224 // 256 == 0).
    batch, in_channels, patch_size, emb_size, img_size = 2, 4, 4, 32, 8
    num_patches = (img_size // patch_size) ** 2            # 4
    pos_rows = img_size // patch_size ** 2 + 1              # 1 (module's formula)

    key = jax.random.PRNGKey(0)
    k_x, k_w, k_b, k_cls, k_pos = jax.random.split(key, 5)

    x = jax.random.normal(k_x, (batch, in_channels, img_size, img_size), jnp.float32)
    conv_w = jax.random.normal(k_w, (emb_size, in_channels, patch_size, patch_size),
                               jnp.float32) * 0.02
    conv_b = jax.random.normal(k_b, (emb_size,), jnp.float32) * 0.02
    cls_tok = jax.random.normal(k_cls, (1, 1, emb_size), jnp.float32)
    positions = jax.random.normal(k_pos, (pos_rows, emb_size), jnp.float32)

    out = patch_embedding(x, conv_w, conv_b, cls_tok, positions, patch_size)
    out = jax.block_until_ready(out)

    # Pure-JAX f32 reference (same semantics as the PyTorch forward)
    p = patch_size
    Hp = Wp = img_size // p
    patches_ref = (x.reshape(batch, in_channels, Hp, p, Wp, p)
                     .transpose(0, 2, 4, 1, 3, 5)
                     .reshape(batch, num_patches, in_channels * p * p))
    proj_ref = patches_ref @ conv_w.reshape(emb_size, -1).T + conv_b[None, None, :]
    cls_ref = jnp.broadcast_to(cls_tok, (batch, 1, emb_size))
    ref = jnp.concatenate([cls_ref, proj_ref], axis=1) + positions

    assert out.shape == (batch, num_patches + 1, emb_size)
    # bf16 operands with f32 accumulation -> loosened tolerance vs f32 reference
    assert jnp.allclose(out, ref, atol=2e-2, rtol=2e-2), \
        float(jnp.max(jnp.abs(out - ref)))
    print("KERNEL_OK")
</pallas_src>

<mosaic_0001>
module attributes {stable_mosaic.version = 11 : i64} {
  func.func @_proj_kernel(%arg0: i32, %arg1: memref<8x64xbf16, #tpu.memory_space<vmem>>, %arg2: memref<64x32xbf16, #tpu.memory_space<vmem>>, %arg3: memref<1x32xf32, #tpu.memory_space<vmem>>, %arg4: memref<8x32xf32, #tpu.memory_space<vmem>>) attributes {dimension_semantics = [#tpu.dimension_semantics<parallel>], iteration_bounds = array<i64: 1>, scalar_prefetch = 0 : i64, scratch_operands = 0 : i64, tpu.core_type = #tpu.core_type<tc>, window_params = [{transform_indices = @transform_0, window_bounds = array<i64: 8, 64>}, {pipeline_mode = #tpu.pipeline_mode<synchronous>, transform_indices = @transform_1, window_bounds = array<i64: 64, 32>}, {pipeline_mode = #tpu.pipeline_mode<synchronous>, transform_indices = @transform_2, window_bounds = array<i64: 1, 32>}, {transform_indices = @transform_3, window_bounds = array<i64: 8, 32>}]} {
    %c0 = arith.constant 0 : index
    %c0_0 = arith.constant 0 : index
    %0 = vector.load %arg1[%c0, %c0_0] : memref<8x64xbf16, #tpu.memory_space<vmem>>, vector<8x64xbf16>
    %c0_1 = arith.constant 0 : index
    %c0_2 = arith.constant 0 : index
    %1 = vector.load %arg2[%c0_1, %c0_2] : memref<64x32xbf16, #tpu.memory_space<vmem>>, vector<64x32xbf16>
    %cst = arith.constant dense<0.000000e+00> : vector<8x32xf32>
    %2 = tpu.matmul %0, %1, %cst {dimension_numbers = #tpu.dot_dimension_numbers<[1], [0], [0], [1], [0, 0, 1, 1], [], []>} : vector<8x64xbf16>, vector<64x32xbf16>, vector<8x32xf32> -> vector<8x32xf32>
    %c0_3 = arith.constant 0 : index
    %c0_4 = arith.constant 0 : index
    %3 = vector.load %arg3[%c0_3, %c0_4] : memref<1x32xf32, #tpu.memory_space<vmem>>, vector<1x32xf32>
    %4 = vector.broadcast %3 : vector<1x32xf32> to vector<8x32xf32>
    %5 = arith.addf %2, %4 : vector<8x32xf32>
    %c0_5 = arith.constant 0 : index
    %c0_6 = arith.constant 0 : index
    %6 = vector.load %arg4[%c0_5, %c0_6] : memref<8x32xf32, #tpu.memory_space<vmem>>, vector<8x32xf32>
    tpu.vector_store %arg4[%c0_5, %c0_6], %5 {strides = array<i32>} : memref<8x32xf32, #tpu.memory_space<vmem>>, vector<8x32xf32>,
    return
  }
  func.func @transform_0(%arg0: i32) -> (i32, i32) {
    %c0_i32 = arith.constant 0 : i32
    %c0_i32_0 = arith.constant 0 : i32
    return %arg0, %c0_i32 : i32, i32
  }
  func.func @transform_1(%arg0: i32) -> (i32, i32) {
    %c0_i32 = arith.constant 0 : i32
    %c0_i32_0 = arith.constant 0 : i32
    %c0_i32_1 = arith.constant 0 : i32
    return %c0_i32, %c0_i32_0 : i32, i32
  }
  func.func @transform_2(%arg0: i32) -> (i32, i32) {
    %c0_i32 = arith.constant 0 : i32
    %c0_i32_0 = arith.constant 0 : i32
    %c0_i32_1 = arith.constant 0 : i32
    return %c0_i32, %c0_i32_0 : i32, i32
  }
  func.func @transform_3(%arg0: i32) -> (i32, i32) {
    %c0_i32 = arith.constant 0 : i32
    %c0_i32_0 = arith.constant 0 : i32
    return %arg0, %c0_i32 : i32, i32
  }
}

</mosaic_0001>

<llo_original>
// kernel: tpu_custom_call.1
$region0: #{tpu_custom_call.1}
  #allocation0 [shape = 'u32[]', space=smem, size = 0x4, offset = 0x4, fixed_abs, tag = 'smem constant byte address 0x4 - core index']
  #allocation1 [shape = 'u32[72,128]{1,0:T(1,128)}', space=vmem, size = 0x9000, scoped, tag = 'internal scratch']
  %s0 = inlined_call_operand.vmem [shape: bf16[8,64], index: 0, kind: input, shape index: {}]
  %s1 = inlined_call_operand.vmem [shape: bf16[64,32], index: 1, kind: input, shape index: {}]
  %s2 = inlined_call_operand.vmem [shape: f32[1,32], index: 2, kind: input, shape index: {}]
  %s3 = inlined_call_operand.hbm [shape: f32[8,32], index: 3, kind: output, shape index: {}]
  %s4 = sld [smem:[#allocation0]]
  $region22: #{tpu_custom_call.1} parent=0
    _
  %s6 = ssub.s32 1, %s4
  %s7 = scalar_select 0, %s6, %s4
  $region1: #{tpu_custom_call.1} parent=0
    #allocation2 [shape = 'u8[4096]{0}', space=vmem, size = 0x1000, scoped, tag = 'output window, operand 0, single buffered']
    #allocation3 [shape = 's32[1]{0}', space=sflag, size = 0x4, scoped, tag = 'scoped memory for tpu_custom_call.1']
    %8 = vsyncpa [#allocation3], 0
    // Predicated region
    $region2: #{tpu_custom_call.1} parent=1 // pred_check
      _
    $region3: #{tpu_custom_call.1} parent=1 // pred_check_branch
      %10 = sbr.rel (0) target = $region5
    $region4: #{tpu_custom_call.1} parent=1 // pred_region
      _
    $region5: #{tpu_custom_call.1} parent=1 // pred_fallthru
      _
    // Predicated region
    $region6: #{tpu_custom_call.1} parent=1 // pred_check
      _
    $region7: #{tpu_custom_call.1} parent=1 // pred_check_branch
      %12 = sbr.rel (0) target = $region9
    $region8: #{tpu_custom_call.1} parent=1 // pred_region
      _
    $region9: #{tpu_custom_call.1} parent=1 // pred_fallthru
      _
    // Predicated region
    $region10: #{tpu_custom_call.1} parent=1 // pred_check
      _
    $region11: #{tpu_custom_call.1} parent=1 // pred_check_branch
      %14 = sbr.rel (0) target = $region13
    $region12: #{tpu_custom_call.1} parent=1 // pred_region
      _
    $region13: #{tpu_custom_call.1} parent=1 // pred_fallthru
      _
    %v16 = vld [vmem:[%s0] sm:$0xf]
    %v17 = vld [vmem:[%s1] sm:$0xf]
    %v18 = vld [vmem:[%s1 + $0x4] sm:$0xf]
    %v19 = vld [vmem:[%s1 + $0x8] sm:$0xf]
    %v20 = vld [vmem:[%s1 + $0xc] sm:$0xf]
    %v21 = vld [vmem:[%s1 + $0x10] sm:$0xf]
    %v22 = vld [vmem:[%s1 + $0x14] sm:$0xf]
    %v23 = vld [vmem:[%s1 + $0x18] sm:$0xf]
    %v24 = vld [vmem:[%s1 + $0x1c] sm:$0xf]
    %v25 = vld [vmem:[%s2] sm:$0x1]
    %v27 = vperm.slane %v25, 0
    %v37 = vunpack.c.l.b16 %v17
    %v38 = vunpack.c.l.b16 %v18
    %v39 = vunpack.c.l.b16 %v19
    %v40 = vunpack.c.l.b16 %v20
    %v41 = vunpack.c.l.b16 %v21
    %v42 = vunpack.c.l.b16 %v22
    %v43 = vunpack.c.l.b16 %v23
    %v44 = vunpack.c.l.b16 %v24
    %v45 = vpack.c.b16 %v38, %v37
    %v46 = vpack.c.b16 %v40, %v39
    %v47 = vpack.c.b16 %v42, %v41
    %v48 = vpack.c.b16 %v44, %v43
    %vm53 = vcmask 523264
    %v55 = vsel %vm53, %v16, 0
    %57 = vmatpush.bf16.msra.mxu0 0
    %58 = vmatpush.bf16.msra.mxu0 0
    %59 = vmatpush.bf16.msra.mxu0 0
    %60 = vmatpush.bf16.msra.mxu0 0
    %61 = vmatpush.bf16.msra.mxu0 %v48
    %62 = vmatpush.bf16.msra.mxu0 %v47
    %63 = vmatpush.bf16.msra.mxu0 %v46
    %64 = vmatpush.bf16.msra.mxu0 %v45
    %65 = vmatmul.bf16.gmra.mxu0 %v55
    %v66 = vpop.f32.mrf.mxu0
    %v67 = vadd.f32 %v27, %v66
    %v68 = vpop.f32.mrf.mxu0
    %69 = vdwg.mxu0
    %vm70 = vcmask 261120
    %71 = vst.msk [vmem:[#allocation2] sm:$0xff] %vm70, %v67
    // Predicated region
    $region14: #{tpu_custom_call.1} parent=1 // pred_check
      _
    $region15: #{tpu_custom_call.1} parent=1 // pred_check_branch
      %73 = sbr.rel (0) target = $region17
    $region16: #{tpu_custom_call.1} parent=1 // pred_region
      %75 = vsyncadd [#allocation3], 0
      %s77 = sshll.u32 [#allocation2], 4
      %s78 = int_to_ptr.vmem [resolvable:$true] %s77
      %s79 = sshll.u32 %s3, 4
      %s80 = int_to_ptr.hbm [resolvable:$true] %s79
      %82 = dma.vmem_to_hbm [thread:$0]  %s78, 128, %s80, [#allocation3]
    $region17: #{tpu_custom_call.1} parent=1 // pred_fallthru
      _
    // Predicated region
    $region18: #{tpu_custom_call.1} parent=1 // pred_check
      _
    $region19: #{tpu_custom_call.1} parent=1 // pred_check_branch
      %84 = sbr.rel (0) target = $region21
    $region20: #{tpu_custom_call.1} parent=1 // pred_region
      %86 = dma.done [#allocation3], 128
    $region21: #{tpu_custom_call.1} parent=1 // pred_fallthru
      _
    %87 = vsyncpa [#allocation3], 1

</llo_original>
